<compile_context>
chip_gen: v5e
topology: v5e:2x2
jax: 0.10.0
libtpu: 0.0.40
codegen_flags: <defaults>
</compile_context>

<pallas_src>
import math
from functools import partial

import jax
import jax.numpy as jnp
from jax.experimental import pallas as pl
from jax.experimental.pallas import tpu as pltpu


def _round_up(x, m):
    return ((x + m - 1) // m) * m


def _pick_tile(dim, align, cap=1024):
    """Pick a tile from {128,256,512,1024} ∪ {dim} (aligned, <= cap) that
    minimizes padding waste for `dim`; ties go to the larger tile."""
    cands = [c for c in (1024, 512, 256, 128) if c <= cap]
    if dim <= cap and dim % align == 0 and dim not in cands:
        cands.append(dim)
    cands.sort(reverse=True)
    best_t, best_w = None, None
    for t in cands:
        w = _round_up(dim, t) - dim
        if best_w is None or w < best_w:
            best_t, best_w = t, w
    return best_t


# ----------------------------- Pallas kernels --------------------------------

def _gemm_bias_acc_out_kernel(x_ref, w_ref, b_ref, o_ref, *, precision):
    """f32 output path: accumulate directly into the resident output block
    (no VMEM scratch); add bias on the last K step."""
    k = pl.program_id(2)

    @pl.when(k == 0)
    def _init():
        o_ref[...] = jnp.zeros_like(o_ref)

    o_ref[...] += jnp.dot(x_ref[...], w_ref[...],
                          preferred_element_type=jnp.float32,
                          precision=precision)

    @pl.when(k == pl.num_programs(2) - 1)
    def _finalize():
        o_ref[...] += b_ref[...]


def _gemm_bias_scratch_kernel(x_ref, w_ref, b_ref, o_ref, acc_ref, *, precision):
    """Non-f32 output path: f32 VMEM accumulator; bias + cast on last K step."""
    k = pl.program_id(2)

    @pl.when(k == 0)
    def _init():
        acc_ref[...] = jnp.zeros_like(acc_ref)

    acc_ref[...] += jnp.dot(x_ref[...], w_ref[...],
                            preferred_element_type=jnp.float32,
                            precision=precision)

    @pl.when(k == pl.num_programs(2) - 1)
    def _finalize():
        o_ref[...] = (acc_ref[...] + b_ref[...]).astype(o_ref.dtype)


# ------------------------------ Module wrapper -------------------------------

class StructuredMaskingLinear:
    """JAX/Pallas re-implementation of the PyTorch StructuredMaskingLinear."""

    def __init__(self, key, in_dim, out_dim, masking_prob, dim_mode='head',
                 param_dtype=jnp.float32, compute_dtype=jnp.bfloat16,
                 precision=None):
        self.in_dim = in_dim
        self.out_dim = out_dim
        self.dim_mode = dim_mode
        self.compute_dtype = compute_dtype
        # Optional jnp.dot precision (e.g. jax.lax.Precision.HIGHEST for
        # true-f32 accuracy at large K); default None = TPU default
        # (bf16-class even for f32 operands).
        self.precision = precision
        self.tunable_length = int(in_dim * out_dim * (1 - masking_prob))

        k_w, k_b, k_t, k_i = jax.random.split(key, 4)
        bound = 1.0 / math.sqrt(in_dim)
        # base nn.Linear params (deterministic synthetic init)
        self.weight = jax.random.uniform(k_w, (out_dim, in_dim), param_dtype,
                                         -bound, bound)
        self.bias = jax.random.uniform(k_b, (out_dim,), param_dtype,
                                       -bound, bound)

        # ---- structured tunable term, folded into the weight in f32 --------
        # NOTE: the PyTorch module inits tunable_weight to zeros; we use a
        # small deterministic random init so the structured path is actually
        # exercised / testable.
        wT = self.weight.T.astype(jnp.float32)          # (in_dim, out_dim)

        if self.tunable_length < self.out_dim:
            # rank-1 slice-add branch
            self.tunable_weight = 0.1 * jax.random.normal(
                k_t, (self.tunable_length, 1), param_dtype)
            if dim_mode == 'tail':
                self.dim_idx = in_dim - 1
            elif dim_mode == 'head':
                self.dim_idx = 0
            else:  # 'random' -> deterministic stand-in (torch.randint analog)
                self.dim_idx = int(jax.random.randint(k_i, (1,), 0, in_dim)[0])
            wT = wT.at[self.dim_idx, :self.tunable_length].add(
                self.tunable_weight[:, 0].astype(jnp.float32))
        else:
            # masked-block branch
            self.num_cols = math.ceil(in_dim * (1 - masking_prob))
            self.tunable_weight = 0.1 * jax.random.normal(
                k_t, (out_dim, self.num_cols), param_dtype)
            mask = jnp.zeros((out_dim, self.num_cols), param_dtype)
            mask = mask.at[:, :self.num_cols - 1].set(1.0)
            kk = self.tunable_length - self.num_cols * out_dim
            mask = mask.at[:kk, -1].set(1.0)
            self.mask = mask
            twmT = (self.tunable_weight * self.mask).T.astype(jnp.float32)
            if dim_mode == 'tail':
                wT = wT.at[in_dim - self.num_cols:, :].add(twmT)
            else:  # 'head'
                wT = wT.at[:self.num_cols, :].add(twmT)

        self.w_fused = wT                                # (in_dim, out_dim) f32

        # ---- static tile selection for the K (in) and N (out) dims ----------
        in_pad = _round_up(in_dim, 128)
        self.tk = _pick_tile(in_pad, align=128)
        self.in_pad = _round_up(in_pad, self.tk)
        out_pad = _round_up(out_dim, 128)
        self.tn = _pick_tile(out_pad, align=128)
        self.out_pad = _round_up(out_pad, self.tn)

        # ---- padded, compute-dtype operands for the kernel ------------------
        # (Params are static in this script, so the fold/pad is done once.
        #  In training this would be refreshed whenever tunable_weight changes.)
        w_pad = jnp.zeros((self.in_pad, self.out_pad), jnp.float32)
        w_pad = w_pad.at[:in_dim, :out_dim].set(wT)
        self.w_pad = w_pad.astype(compute_dtype)
        b_pad = jnp.zeros((1, self.out_pad), jnp.float32)
        b_pad = b_pad.at[0, :out_dim].set(self.bias.astype(jnp.float32))
        self.b_pad = b_pad

    def __call__(self, x):
        B, S, Din = x.shape
        assert Din == self.in_dim
        M = B * S
        out_dtype = x.dtype
        tn, tk = self.tn, self.tk

        # ---- adaptive row tile: minimize padded rows, cap at 1024 -----------
        M8 = _round_up(M, 8)
        tm = _pick_tile(M8, align=8)
        M_pad = _round_up(M8, tm)

        # ---- keep >= 2 parallel blocks so both v7x TensorCores get work -----
        if (M_pad // tm) * (self.out_pad // tn) < 2:
            tn_half = tn // 2
            if tn_half >= 128 and tn_half % 128 == 0 and self.out_pad % tn_half == 0:
                tn = tn_half
            else:
                tm_half = _round_up(max(tm // 2, 8), 8)
                if tm_half < tm:
                    tm = tm_half
                    M_pad = _round_up(M8, tm)

        # ---- activation prep: no-pad fast path when already aligned ---------
        xf = x.reshape(M, Din).astype(self.compute_dtype)
        if M_pad == M and self.in_pad == Din:
            x_in = xf                                     # zero extra HBM passes
        else:
            x_in = jnp.pad(xf, ((0, M_pad - M), (0, self.in_pad - Din)))

        grid = (M_pad // tm, self.out_pad // tn, self.in_pad // tk)

        # ---- kernel variant + VMEM budget ------------------------------------
        if out_dtype == jnp.float32:
            kernel = partial(_gemm_bias_acc_out_kernel, precision=self.precision)
            scratch = []
        else:
            kernel = partial(_gemm_bias_scratch_kernel, precision=self.precision)
            scratch = [pltpu.VMEM((tm, tn), jnp.float32)]

        cb = jnp.dtype(self.compute_dtype).itemsize
        ob = jnp.dtype(out_dtype).itemsize
        est = 2 * tm * tk * cb + 2 * tk * tn * cb + 2 * tm * tn * ob
        if out_dtype != jnp.float32:
            est += tm * tn * 4
        vmem_limit = int(min(100 * 2**20, max(48 * 2**20, est + 16 * 2**20)))

        out = pl.pallas_call(
            kernel,
            out_shape=jax.ShapeDtypeStruct((M_pad, self.out_pad), out_dtype),
            grid_spec=pltpu.PrefetchScalarGridSpec(
                num_scalar_prefetch=0,
                grid=grid,
                in_specs=[
                    pl.BlockSpec((tm, tk), lambda i, j, k: (i, k)),   # x
                    pl.BlockSpec((tk, tn), lambda i, j, k: (k, j)),   # W^T (fused)
                    pl.BlockSpec((1, tn), lambda i, j, k: (0, j)),    # bias
                ],
                out_specs=pl.BlockSpec((tm, tn), lambda i, j, k: (i, j)),
                scratch_shapes=scratch,
            ),
            compiler_params=pltpu.CompilerParams(
                dimension_semantics=("parallel", "parallel", "arbitrary"),
                vmem_limit_bytes=vmem_limit),
        )(x_in, self.w_pad, self.b_pad)

        return out[:M, :self.out_dim].reshape(B, S, self.out_dim)


# ---------------------------------- main -------------------------------------

if __name__ == "__main__":
    key = jax.random.PRNGKey(0)
    k_x, k_m1, k_m2, k_m3, k_m4 = jax.random.split(key, 5)

    B, S, Din, Dout = 2, 8, 32, 32
    x = jax.random.normal(k_x, (B, S, Din), jnp.float32)

    # ---- case 1: masked-block branch, head, f32 compute (tight check) -------
    m1 = StructuredMaskingLinear(k_m1, Din, Dout, masking_prob=0.5,
                                 dim_mode='head', compute_dtype=jnp.float32)
    y1 = m1(x)
    ref1 = x @ m1.weight.T + m1.bias
    ref1 = ref1 + x[..., :m1.num_cols] @ (m1.tunable_weight * m1.mask).T
    assert jnp.allclose(y1, ref1, atol=1e-4, rtol=1e-4), "masked-head mismatch"

    # ---- case 2: rank-1 slice-add branch, f32 compute (tight check) ---------
    m2 = StructuredMaskingLinear(k_m2, Din, Dout, masking_prob=0.98,
                                 dim_mode='head', compute_dtype=jnp.float32)
    y2 = m2(x)
    ref2 = x @ m2.weight.T + m2.bias
    tmp2 = x[..., m2.dim_idx:m2.dim_idx + 1] @ m2.tunable_weight.T
    ref2 = ref2.at[..., :m2.tunable_length].add(tmp2)
    assert jnp.allclose(y2, ref2, atol=1e-4, rtol=1e-4), "rank-1 mismatch"

    # ---- case 3: masked-block branch, tail, f32 compute (tight check) -------
    m3 = StructuredMaskingLinear(k_m3, Din, Dout, masking_prob=0.5,
                                 dim_mode='tail', compute_dtype=jnp.float32)
    y3 = m3(x)
    ref3 = x @ m3.weight.T + m3.bias
    ref3 = ref3 + x[..., -m3.num_cols:] @ (m3.tunable_weight * m3.mask).T
    assert jnp.allclose(y3, ref3, atol=1e-4, rtol=1e-4), "masked-tail mismatch"

    # ---- case 4: bf16 MXU path, checked vs bf16-rounded-operand reference ---
    m4 = StructuredMaskingLinear(k_m4, Din, Dout, masking_prob=0.5,
                                 dim_mode='head', compute_dtype=jnp.bfloat16)
    y4 = m4(x)
    x_b = x.astype(jnp.bfloat16).astype(jnp.float32)
    w_b = m4.w_fused.astype(jnp.bfloat16).astype(jnp.float32)
    ref4 = x_b @ w_b + m4.bias
    assert jnp.allclose(y4, ref4, atol=5e-3, rtol=5e-3), "bf16 path mismatch"

    # ---- case 5: M not a multiple of 8 (exercise row padding) ---------------
    x_odd = jax.random.normal(jax.random.PRNGKey(7), (3, 5, Din), jnp.float32)
    y5 = m1(x_odd)
    ref5 = x_odd @ m1.weight.T + m1.bias
    ref5 = ref5 + x_odd[..., :m1.num_cols] @ (m1.tunable_weight * m1.mask).T
    assert jnp.allclose(y5, ref5, atol=1e-4, rtol=1e-4), "odd-M padding mismatch"

    jax.block_until_ready((y1, y2, y3, y4, y5))
    print("KERNEL_OK")
</pallas_src>

<mosaic_0001>
module attributes {stable_mosaic.version = 11 : i64} {
  func.func @_gemm_bias_acc_out_kernel(%arg0: i32, %arg1: i32, %arg2: i32, %arg3: memref<8x128xf32, #tpu.memory_space<vmem>>, %arg4: memref<128x128xf32, #tpu.memory_space<vmem>>, %arg5: memref<1x128xf32, #tpu.memory_space<vmem>>, %arg6: memref<8x128xf32, #tpu.memory_space<vmem>>) attributes {dimension_semantics = [#tpu.dimension_semantics<parallel>, #tpu.dimension_semantics<parallel>, #tpu.dimension_semantics<arbitrary>], iteration_bounds = array<i64: 2, 1, 1>, scalar_prefetch = 0 : i64, scratch_operands = 0 : i64, tpu.core_type = #tpu.core_type<tc>, window_params = [{transform_indices = @transform_0, window_bounds = array<i64: 8, 128>}, {transform_indices = @transform_1, window_bounds = array<i64: 128, 128>}, {transform_indices = @transform_2, window_bounds = array<i64: 1, 128>}, {transform_indices = @transform_3, window_bounds = array<i64: 8, 128>}]} {
    %c0_i32 = arith.constant 0 : i32
    %0 = arith.cmpi eq, %arg2, %c0_i32 : i32
    %1 = arith.extui %0 : i1 to i32
    %c0_i32_0 = arith.constant 0 : i32
    %2 = arith.cmpi ne, %1, %c0_i32_0 : i32
    scf.if %2 {
      %cst_10 = arith.constant 0.000000e+00 : f32
      %12 = vector.broadcast %cst_10 : f32 to vector<8x128xf32>
      %c0_11 = arith.constant 0 : index
      %c0_12 = arith.constant 0 : index
      %13 = vector.load %arg6[%c0_11, %c0_12] : memref<8x128xf32, #tpu.memory_space<vmem>>, vector<8x128xf32>
      tpu.vector_store %arg6[%c0_11, %c0_12], %12 {strides = array<i32>} : memref<8x128xf32, #tpu.memory_space<vmem>>, vector<8x128xf32>,
    } else {
    }
    %c0 = arith.constant 0 : index
    %c0_1 = arith.constant 0 : index
    %3 = vector.load %arg6[%c0, %c0_1] : memref<8x128xf32, #tpu.memory_space<vmem>>, vector<8x128xf32>
    %c0_2 = arith.constant 0 : index
    %c0_3 = arith.constant 0 : index
    %4 = vector.load %arg3[%c0_2, %c0_3] : memref<8x128xf32, #tpu.memory_space<vmem>>, vector<8x128xf32>
    %c0_4 = arith.constant 0 : index
    %c0_5 = arith.constant 0 : index
    %5 = vector.load %arg4[%c0_4, %c0_5] : memref<128x128xf32, #tpu.memory_space<vmem>>, vector<128x128xf32>
    %cst = arith.constant dense<0.000000e+00> : vector<8x128xf32>
    %6 = tpu.matmul %4, %5, %cst {dimension_numbers = #tpu.dot_dimension_numbers<[1], [0], [0], [1], [0, 0, 1, 1], [], []>} : vector<8x128xf32>, vector<128x128xf32>, vector<8x128xf32> -> vector<8x128xf32>
    %7 = arith.addf %3, %6 : vector<8x128xf32>
    %c0_6 = arith.constant 0 : index
    %c0_7 = arith.constant 0 : index
    %8 = vector.load %arg6[%c0_6, %c0_7] : memref<8x128xf32, #tpu.memory_space<vmem>>, vector<8x128xf32>
    tpu.vector_store %arg6[%c0_6, %c0_7], %7 {strides = array<i32>} : memref<8x128xf32, #tpu.memory_space<vmem>>, vector<8x128xf32>,
    %c0_i32_8 = arith.constant 0 : i32
    %9 = arith.cmpi eq, %arg2, %c0_i32_8 : i32
    %10 = arith.extui %9 : i1 to i32
    %c0_i32_9 = arith.constant 0 : i32
    %11 = arith.cmpi ne, %10, %c0_i32_9 : i32
    scf.if %11 {
      %c0_10 = arith.constant 0 : index
      %c0_11 = arith.constant 0 : index
      %12 = vector.load %arg6[%c0_10, %c0_11] : memref<8x128xf32, #tpu.memory_space<vmem>>, vector<8x128xf32>
      %c0_12 = arith.constant 0 : index
      %c0_13 = arith.constant 0 : index
      %13 = vector.load %arg5[%c0_12, %c0_13] : memref<1x128xf32, #tpu.memory_space<vmem>>, vector<1x128xf32>
      %14 = vector.broadcast %13 : vector<1x128xf32> to vector<8x128xf32>
      %15 = arith.addf %12, %14 : vector<8x128xf32>
      %c0_14 = arith.constant 0 : index
      %c0_15 = arith.constant 0 : index
      %16 = vector.load %arg6[%c0_14, %c0_15] : memref<8x128xf32, #tpu.memory_space<vmem>>, vector<8x128xf32>
      tpu.vector_store %arg6[%c0_14, %c0_15], %15 {strides = array<i32>} : memref<8x128xf32, #tpu.memory_space<vmem>>, vector<8x128xf32>,
    } else {
    }
    return
  }
  func.func @transform_0(%arg0: i32, %arg1: i32, %arg2: i32) -> (i32, i32) {
    %c0_i32 = arith.constant 0 : i32
    return %arg0, %arg2 : i32, i32
  }
  func.func @transform_1(%arg0: i32, %arg1: i32, %arg2: i32) -> (i32, i32) {
    %c0_i32 = arith.constant 0 : i32
    return %arg2, %arg1 : i32, i32
  }
  func.func @transform_2(%arg0: i32, %arg1: i32, %arg2: i32) -> (i32, i32) {
    %c0_i32 = arith.constant 0 : i32
    %c0_i32_0 = arith.constant 0 : i32
    return %c0_i32, %arg1 : i32, i32
  }
  func.func @transform_3(%arg0: i32, %arg1: i32, %arg2: i32) -> (i32, i32) {
    %c0_i32 = arith.constant 0 : i32
    return %arg0, %arg1 : i32, i32
  }
}

</mosaic_0001>

<llo_original>
// kernel: tpu_custom_call.1
$region0: #{tpu_custom_call.1}
  #allocation0 [shape = 'u32[]', space=smem, size = 0x4, offset = 0x4, fixed_abs, tag = 'smem constant byte address 0x4 - core index']
  #allocation1 [shape = 'u32[72,128]{1,0:T(1,128)}', space=vmem, size = 0x9000, scoped, tag = 'internal scratch']
  %s0 = inlined_call_operand.hbm [shape: f32[16,128], index: 0, kind: input, shape index: {}]
  %s1 = inlined_call_operand.hbm [shape: f32[128,128], index: 1, kind: input, shape index: {}]
  %s2 = inlined_call_operand.vmem [shape: f32[1,128], index: 2, kind: input, shape index: {}]
  %s3 = inlined_call_operand.hbm [shape: f32[16,128], index: 3, kind: output, shape index: {}]
  %s4 = sld [smem:[#allocation0]]
  $region61: #{tpu_custom_call.1} parent=0
    _
  %s6 = ssub.s32 1, %s4
  %s7 = scalar_select 0, %s6, %s4
  $region1: #{tpu_custom_call.1} parent=0
    #allocation2 [shape = 'u8[8192]{0}', space=vmem, size = 0x2000, scoped, tag = 'input window, operand 0']
    #allocation3 [shape = 's32[2]{0}', space=sflag, size = 0x8, scoped, tag = 'scoped memory for tpu_custom_call.1']
    #allocation4 [shape = 's32[2]{0}', space=sflag, size = 0x8, scoped, tag = 'scoped memory for tpu_custom_call.1']
    #allocation5 [shape = 'u8[65536]{0}', space=vmem, size = 0x10000, scoped, tag = 'input window, operand 1, single buffered']
    #allocation6 [shape = 's32[1]{0}', space=sflag, size = 0x4, scoped, tag = 'scoped memory for tpu_custom_call.1']
    #allocation7 [shape = 'u8[8192]{0}', space=vmem, size = 0x2000, scoped, tag = 'output window, operand 0']
    %8 = vsyncpa [#allocation3], 0
    %s9 = scalar_lea.sflag [#allocation3], 1
    %10 = vsyncpa %s9, 0
    %11 = vsyncpa [#allocation6], 0
    %12 = vsyncpa [#allocation4], 0
    %s13 = scalar_lea.sflag [#allocation4], 1
    %14 = vsyncpa %s13, 0
    loop: start=0, step=1, limit=4
    $region2: #{tpu_custom_call.1} parent=1 // loop_pre_header
      _
    $region3: #{tpu_custom_call.1} parent=1 // loop_header
      %s16 = sphi 0, %s20
      %p17 = scmp.ge.s32.totalorder %s16, 4
      %s23 = sphi 0, %s42
      %s24 = sphi 0, %s38
      %s25 = sphi 0, %s34
      %s26 = sphi 0, %s23
      %s27 = sphi 0, %s24
      %s28 = sphi 0, %s25
      %s29 = sphi 0, %s26
      %s30 = sphi 0, %s27
      %s31 = sphi 0, %s28
      %s47 = sphi 0, %s49
      %s50 = sphi 0, %s47
      %s51 = sphi 0, %s50
      %s67 = sphi 0, %s51
      %s75 = sphi 0, %s77
      %s78 = sphi 0, %s75
      %s79 = sphi 0, %s78
      %s95 = sphi 0, %s79
      %s101 = sphi 0, %s103
      %s104 = sphi 0, %s101
      %s105 = sphi 0, %s104
      %s121 = sphi 0, %s105
      %s129 = sphi 0, %s131
      %s132 = sphi 0, %s129
      %s133 = sphi 0, %s132
      %s149 = sphi 0, %s133
    $region4: #{tpu_custom_call.1} parent=1 // loop_header_branch
      %19 = sbr.rel (%p17) target = $region8
    $region5: #{tpu_custom_call.1} parent=1 // loop_body
      %s21 = ssub.s32 %s16, 1
      %s22 = ssub.s32 %s16, 2
      %s32 = sadd.s32 1, %s25
      %p33 = scmp.ge.s32.totalorder %s32, 1
      %s34 = scalar_select %p33, 0, %s32
      %s35 = sadd.s32 1, %s24
      %s36 = scalar_select %p33, %s35, %s24
      %p37 = scmp.ge.s32.totalorder %s36, 1
      %s38 = scalar_select %p37, 0, %s36
      %s39 = sadd.s32 1, %s23
      %s40 = scalar_select %p37, %s39, %s23
      %p41 = scmp.ge.s32.totalorder %s40, 2
      %s42 = scalar_select %p41, 0, %s40
      %s43 = ssub.s32 %s23, %s42
      %s44 = ssub.s32 %s25, %s34
      %s45 = sor.u32 %s43, %s44
      %p46 = scmp.eq.s32.totalorder %s45, 0
      %s48 = sadd.s32 %s47, 1
      %s49 = scalar_select %p46, %s47, %s48
      %p52 = pneg %p46
      %p53 = scmp.eq.s32.totalorder %s16, 1
      %p54 = por %p52, %p53
      %p55 = scmp.ne.s32.totalorder %s47, %s50
      %p56 = scmp.eq.s32.totalorder %s16, 0
      %p57 = por %p55, %p56
      %p58 = scmp.ne.s32.totalorder %s47, %s50
      %p59 = scmp.eq.s32.totalorder %s21, 1
      %p60 = por %p58, %p59
      %p61 = scmp.ne.s32.totalorder %s50, %s51
      %p62 = scmp.eq.s32.totalorder %s21, 0
      %p63 = por %p61, %p62
      %p64 = scmp.ne.s32.totalorder %s50, %s51
      %p65 = scmp.eq.s32.totalorder %s22, 1
      %p66 = por %p64, %p65
      %p68 = scmp.ne.s32.totalorder %s51, %s67
      %p69 = scmp.eq.s32.totalorder %s22, 0
      %p70 = por %p68, %p69
      %s71 = ssub.s32 %s25, %s34
      %s72 = ssub.s32 %s24, %s38
      %s73 = sor.u32 %s71, %s72
      %p74 = scmp.eq.s32.totalorder %s73, 0
      %s76 = sadd.s32 %s75, 1
      %s77 = scalar_select %p74, %s75, %s76
      %p80 = pneg %p74
      %p81 = scmp.eq.s32.totalorder %s16, 1
      %p82 = por %p80, %p81
      %p83 = scmp.ne.s32.totalorder %s75, %s78
      %p84 = scmp.eq.s32.totalorder %s16, 0
      %p85 = por %p83, %p84
      %p86 = scmp.ne.s32.totalorder %s75, %s78
      %p87 = scmp.eq.s32.totalorder %s21, 1
      %p88 = por %p86, %p87
      %p89 = scmp.ne.s32.totalorder %s78, %s79
      %p90 = scmp.eq.s32.totalorder %s21, 0
      %p91 = por %p89, %p90
      %p92 = scmp.ne.s32.totalorder %s78, %s79
      %p93 = scmp.eq.s32.totalorder %s22, 1
      %p94 = por %p92, %p93
      %p96 = scmp.ne.s32.totalorder %s79, %s95
      %p97 = scmp.eq.s32.totalorder %s22, 0
      %p98 = por %p96, %p97
      %s99 = ssub.s32 %s24, %s38
      %p100 = scmp.eq.s32.totalorder %s99, 0
      %s102 = sadd.s32 %s101, 1
      %s103 = scalar_select %p100, %s101, %s102
      %p106 = pneg %p100
      %p107 = scmp.eq.s32.totalorder %s16, 1
      %p108 = por %p106, %p107
      %p109 = scmp.ne.s32.totalorder %s101, %s104
      %p110 = scmp.eq.s32.totalorder %s16, 0
      %p111 = por %p109, %p110
      %p112 = scmp.ne.s32.totalorder %s101, %s104
      %p113 = scmp.eq.s32.totalorder %s21, 1
      %p114 = por %p112, %p113
      %p115 = scmp.ne.s32.totalorder %s104, %s105
      %p116 = scmp.eq.s32.totalorder %s21, 0
      %p117 = por %p115, %p116
      %p118 = scmp.ne.s32.totalorder %s104, %s105
      %p119 = scmp.eq.s32.totalorder %s22, 1
      %p120 = por %p118, %p119
      %p122 = scmp.ne.s32.totalorder %s105, %s121
      %p123 = scmp.eq.s32.totalorder %s22, 0
      %p124 = por %p122, %p123
      %s125 = ssub.s32 %s23, %s42
      %s126 = ssub.s32 %s24, %s38
      %s127 = sor.u32 %s125, %s126
      %p128 = scmp.eq.s32.totalorder %s127, 0
      %s130 = sadd.s32 %s129, 1
      %s131 = scalar_select %p128, %s129, %s130
      %p134 = pneg %p128
      %p135 = scmp.eq.s32.totalorder %s16, 1
      %p136 = por %p134, %p135
      %p137 = scmp.ne.s32.totalorder %s129, %s132
      %p138 = scmp.eq.s32.totalorder %s16, 0
      %p139 = por %p137, %p138
      %p140 = scmp.ne.s32.totalorder %s129, %s132
      %p141 = scmp.eq.s32.totalorder %s21, 1
      %p142 = por %p140, %p141
      %p143 = scmp.ne.s32.totalorder %s132, %s133
      %p144 = scmp.eq.s32.totalorder %s21, 0
      %p145 = por %p143, %p144
      %p146 = scmp.ne.s32.totalorder %s132, %s133
      %p147 = scmp.eq.s32.totalorder %s22, 1
      %p148 = por %p146, %p147
      %p150 = scmp.ne.s32.totalorder %s133, %s149
      %p151 = scmp.eq.s32.totalorder %s22, 0
      %p152 = por %p150, %p151
      %p153 = scmp.le.s32.totalorder 1, %s16
      %p154 = scmp.lt.s32.totalorder %s16, 3
      %p155 = pnand %p153, %p154
      %p156 = pneg %p155
      // Predicated region
      $region9: #{tpu_custom_call.1} parent=5 // pred_check
        _
      $region10: #{tpu_custom_call.1} parent=5 // pred_check_branch
        %158 = sbr.rel (%p155) target = $region12
      $region11: #{tpu_custom_call.1} parent=5 // pred_region
        %s159 = ssub.s32 %s16, 1
        // Predicated region
        $region13: #{tpu_custom_call.1} parent=11 // pred_check
          %p160 = pneg %p91
        $region14: #{tpu_custom_call.1} parent=11 // pred_check_branch
          %162 = sbr.rel (%p160) target = $region16
        $region15: #{tpu_custom_call.1} parent=11 // pred_region
          %s163 = smul.u32 16, %s28
          %165 = vsyncadd [#allocation6], 0
          %s166 = sadd.s32 %s27, %s163
          %s167 = smul.addr %s166, 8
          %s168 = scalar_lea.hbm %s1, %s167
          %s169 = sshll.u32 %s168, 4
          %s170 = int_to_ptr.hbm [resolvable:$true] %s169
          %s171 = sshll.u32 [#allocation5], 4
          %s172 = int_to_ptr.vmem [resolvable:$true] %s171
          %177 = dma.hbm_to_vmem [thread:$0]  %s170, 2048, %s172, [#allocation6], 128, 128, 8
        $region16: #{tpu_custom_call.1} parent=11 // pred_fallthru
          _
        // Predicated region
        $region17: #{tpu_custom_call.1} parent=11 // pred_check
          %p178 = pneg %p117
        $region18: #{tpu_custom_call.1} parent=11 // pred_check_branch
          %180 = sbr.rel (%p178) target = $region20
        $region19: #{tpu_custom_call.1} parent=11 // pred_region
          %p181 = scmp.lt.s32.totalorder %s27, 0
          %s182 = scalar_select %p181, %s27, 0
          %s183 = scalar_lea.vmem %s2, %s182
        $region20: #{tpu_custom_call.1} parent=11 // pred_fallthru
          _
      $region12: #{tpu_custom_call.1} parent=5 // pred_fallthru
        _
      %p184 = scmp.lt.s32.totalorder %s16, 2
      // Predicated region
      $region21: #{tpu_custom_call.1} parent=5 // pred_check
        %p185 = pneg %p184
      $region22: #{tpu_custom_call.1} parent=5 // pred_check_branch
        %187 = sbr.rel (%p185) target = $region24
      $region23: #{tpu_custom_call.1} parent=5 // pred_region
        // Predicated region
        $region25: #{tpu_custom_call.1} parent=23 // pred_check
          %p188 = pneg %p57
        $region26: #{tpu_custom_call.1} parent=23 // pred_check_branch
          %190 = sbr.rel (%p188) target = $region28
        $region27: #{tpu_custom_call.1} parent=23 // pred_region
          %s191 = sand.u32 %s47, 1
          %s192 = scalar_lea.sflag [#allocation3], %s191
          %s193 = sand.u32 %s47, 1
          %s194 = smul.addr %s193, 8
          %s195 = scalar_lea.vmem [#allocation2], %s194
          %197 = vsyncadd %s192, 0
          %s198 = sadd.s32 %s25, %s23
          %s199 = smul.addr %s198, 8
          %s200 = scalar_lea.hbm %s0, %s199
          %s202 = sshll.u32 %s200, 4
          %s203 = int_to_ptr.hbm [resolvable:$true] %s202
          %s204 = sshll.u32 %s195, 4
          %s205 = int_to_ptr.vmem [resolvable:$true] %s204
          %207 = dma.hbm_to_vmem [thread:$0]  %s203, 128, %s205, %s192
        $region28: #{tpu_custom_call.1} parent=23 // pred_fallthru
          _
      $region24: #{tpu_custom_call.1} parent=5 // pred_fallthru
        _
      %p208 = scmp.le.s32.totalorder 1, %s16
      %p209 = scmp.lt.s32.totalorder %s16, 3
      %p210 = pnand %p208, %p209
      %p211 = pneg %p210
      // Predicated region
      $region29: #{tpu_custom_call.1} parent=5 // pred_check
        _
      $region30: #{tpu_custom_call.1} parent=5 // pred_check_branch
        %213 = sbr.rel (%p210) target = $region32
      $region31: #{tpu_custom_call.1} parent=5 // pred_region
        %s214 = ssub.s32 %s16, 1
        %s215 = sand.u32 %s50, 1
        %s216 = scalar_lea.sflag [#allocation3], %s215
        %s217 = sand.u32 %s50, 1
        %s218 = smul.addr %s217, 8
        %s219 = scalar_lea.vmem [#allocation2], %s218
        // Predicated region
        $region33: #{tpu_custom_call.1} parent=31 // pred_check
          %p220 = pneg %p63
        $region34: #{tpu_custom_call.1} parent=31 // pred_check_branch
          %222 = sbr.rel (%p220) target = $region36
        $region35: #{tpu_custom_call.1} parent=31 // pred_region
          %224 = dma.done %s216, 128
        $region36: #{tpu_custom_call.1} parent=31 // pred_fallthru
          _
        // Predicated region
        $region37: #{tpu_custom_call.1} parent=31 // pred_check
          %p225 = pneg %p91
        $region38: #{tpu_custom_call.1} parent=31 // pred_check_branch
          %227 = sbr.rel (%p225) target = $region40
        $region39: #{tpu_custom_call.1} parent=31 // pred_region
          %229 = dma.done [#allocation6], 2048
        $region40: #{tpu_custom_call.1} parent=31 // pred_fallthru
          _
        %s230 = sand.u32 %s50, 1
        %s231 = scalar_lea.sflag [#allocation3], %s230
        %s232 = sand.u32 %s50, 1
        %s233 = smul.addr %s232, 8
        %s234 = scalar_lea.vmem [#allocation2], %s233
        %p235 = pneg %p63
        %p236 = pneg %p60
        %p237 = pneg %p91
        %p238 = pneg %p88
        %p239 = scmp.lt.s32.totalorder %s27, 0
        %s240 = scalar_select %p239, %s27, 0
        %s241 = scalar_lea.vmem %s2, %s240
        %p242 = pneg %p117
        %p243 = pneg %p114
        %p244 = pneg %p145
        %p245 = pneg %p142
        %s246 = sand.u32 %s132, 1
        %s247 = scalar_lea.sflag [#allocation4], %s246
        %s248 = sand.u32 %s132, 1
        %s249 = smul.addr %s248, 8
        %s250 = scalar_lea.vmem [#allocation7], %s249
        %s251 = smul.u32 16, %s28
        %p252 = scmp.lt.s32.totalorder %s27, 0
        %s253 = scalar_select %p252, %s27, 0
        %s254 = scalar_lea.vmem %s2, %s253
        %p255 = scmp.eq.s32.totalorder %s28, 0
        // Predicated region
        $region41: #{tpu_custom_call.1} parent=31 // pred_check
          %p256 = pneg %p255
        $region42: #{tpu_custom_call.1} parent=31 // pred_check_branch
          %258 = sbr.rel (%p256) target = $region44
        $region43: #{tpu_custom_call.1} parent=31 // pred_region
          %259 = vst [vmem:[%s250] sm:$0xff] 0.0
        $region44: #{tpu_custom_call.1} parent=31 // pred_fallthru
          _
        %v260 = vld [vmem:[%s250] sm:$0xff]
        %v261 = vld [vmem:[%s219] sm:$0xff]
        %v262 = vld [vmem:[#allocation5] sm:$0xff]
        %v263 = vld [vmem:[#allocation5 + $0x8] sm:$0xff]
        %v264 = vld [vmem:[#allocation5 + $0x10] sm:$0xff]
        %v265 = vld [vmem:[#allocation5 + $0x18] sm:$0xff]
        %v266 = vld [vmem:[#allocation5 + $0x20] sm:$0xff]
        %v267 = vld [vmem:[#allocation5 + $0x28] sm:$0xff]
        %v268 = vld [vmem:[#allocation5 + $0x30] sm:$0xff]
        %v269 = vld [vmem:[#allocation5 + $0x38] sm:$0xff]
        %v270 = vld [vmem:[#allocation5 + $0x40] sm:$0xff]
        %v271 = vld [vmem:[#allocation5 + $0x48] sm:$0xff]
        %v272 = vld [vmem:[#allocation5 + $0x50] sm:$0xff]
        %v273 = vld [vmem:[#allocation5 + $0x58] sm:$0xff]
        %v274 = vld [vmem:[#allocation5 + $0x60] sm:$0xff]
        %v275 = vld [vmem:[#allocation5 + $0x68] sm:$0xff]
        %v276 = vld [vmem:[#allocation5 + $0x70] sm:$0xff]
        %v277 = vld [vmem:[#allocation5 + $0x78] sm:$0xff]
        %278 = vmatpush.msra.mxu0 %v277
        %279 = vmatpush.msra.mxu0 %v276
        %280 = vmatpush.msra.mxu0 %v275
        %281 = vmatpush.msra.mxu0 %v274
        %282 = vmatpush.msra.mxu0 %v273
        %283 = vmatpush.msra.mxu0 %v272
        %284 = vmatpush.msra.mxu0 %v271
        %285 = vmatpush.msra.mxu0 %v270
        %286 = vmatpush.msra.mxu0 %v269
        %287 = vmatpush.msra.mxu0 %v268
        %288 = vmatpush.msra.mxu0 %v267
        %289 = vmatpush.msra.mxu0 %v266
        %290 = vmatpush.msra.mxu0 %v265
        %291 = vmatpush.msra.mxu0 %v264
        %292 = vmatpush.msra.mxu0 %v263
        %293 = vmatpush.msra.mxu0 %v262
        %294 = vmatmul.f32.gmra.mxu0 %v261
        %v295 = vpop.f32.mrf.mxu0
        %v296 = vadd.f32 0.0, %v295
        %297 = vdwg.mxu0
        %v298 = vadd.f32 %v260, %v296
        %299 = vst [vmem:[%s250] sm:$0xff] %v298
        // Predicated region
        $region45: #{tpu_custom_call.1} parent=31 // pred_check
          %p300 = pneg %p255
        $region46: #{tpu_custom_call.1} parent=31 // pred_check_branch
          %302 = sbr.rel (%p300) target = $region48
        $region47: #{tpu_custom_call.1} parent=31 // pred_region
          %v303 = vld [vmem:[%s250] sm:$0xff]
          %v304 = vld [vmem:[%s254] sm:$0x1]
          %v306 = vperm.slane %v304, 0
          %v308 = vadd.f32 %v303, %v306
          %309 = vst [vmem:[%s250] sm:$0xff] %v308
        $region48: #{tpu_custom_call.1} parent=31 // pred_fallthru
          _
        %s310 = sand.u32 %s132, 1
        %s311 = scalar_lea.sflag [#allocation4], %s310
        %s312 = sand.u32 %s132, 1
        %s313 = smul.addr %s312, 8
        %s314 = scalar_lea.vmem [#allocation7], %s313
        // Predicated region
        $region49: #{tpu_custom_call.1} parent=31 // pred_check
          %p315 = pneg %p142
        $region50: #{tpu_custom_call.1} parent=31 // pred_check_branch
          %317 = sbr.rel (%p315) target = $region52
        $region51: #{tpu_custom_call.1} parent=31 // pred_region
          %319 = vsyncadd %s311, 0
          %s320 = sadd.s32 %s27, %s26
          %s321 = smul.addr %s320, 8
          %s322 = scalar_lea.hbm %s3, %s321
          %s324 = sshll.u32 %s314, 4
          %s325 = int_to_ptr.vmem [resolvable:$true] %s324
          %s326 = sshll.u32 %s322, 4
          %s327 = int_to_ptr.hbm [resolvable:$true] %s326
          %329 = dma.vmem_to_hbm [thread:$0]  %s325, 128, %s327, %s311
        $region52: #{tpu_custom_call.1} parent=31 // pred_fallthru
          _
      $region32: #{tpu_custom_call.1} parent=5 // pred_fallthru
        _
      %p330 = scmp.le.s32.totalorder 2, %s16
      // Predicated region
      $region53: #{tpu_custom_call.1} parent=5 // pred_check
        %p331 = pneg %p330
      $region54: #{tpu_custom_call.1} parent=5 // pred_check_branch
        %333 = sbr.rel (%p331) target = $region56
      $region55: #{tpu_custom_call.1} parent=5 // pred_region
        %s334 = ssub.s32 %s16, 2
        // Predicated region
        $region57: #{tpu_custom_call.1} parent=55 // pred_check
          %p335 = pneg %p148
        $region58: #{tpu_custom_call.1} parent=55 // pred_check_branch
          %337 = sbr.rel (%p335) target = $region60
        $region59: #{tpu_custom_call.1} parent=55 // pred_region
          %s338 = sand.u32 %s133, 1
          %s339 = scalar_lea.sflag [#allocation4], %s338
          %s340 = sand.u32 %s133, 1
          %s341 = smul.addr %s340, 8
          %s342 = scalar_lea.vmem [#allocation7], %s341
          %344 = dma.done %s339, 128
        $region60: #{tpu_custom_call.1} parent=55 // pred_fallthru
          _
      $region56: #{tpu_custom_call.1} parent=5 // pred_fallthru
        _
    $region6: #{tpu_custom_call.1} parent=1 // loop_footer
      %s20 = sadd.s32 1, %s16
    $region7: #{tpu_custom_call.1} parent=1 // loop_footer_branch
      %15 = sbr.rel target = $region3
    $region8: #{tpu_custom_call.1} parent=1 // loop_exit
      _
    %345 = vsyncpa [#allocation3], 1
    %s346 = scalar_lea.sflag [#allocation3], 1
    %347 = vsyncpa %s346, 1
    %348 = vsyncpa [#allocation6], 1
    %349 = vsyncpa [#allocation4], 1
    %s350 = scalar_lea.sflag [#allocation4], 1
    %351 = vsyncpa %s350, 1

</llo_original>
